<compile_context>
chip_gen: v7x
topology: tpu7x:2x2x1
jax: 0.10.0
libtpu: 0.0.40
codegen_flags: <defaults>
</compile_context>

<pallas_src>
import functools

import jax
import jax.numpy as jnp
from jax.experimental import pallas as pl
from jax.experimental.pallas import tpu as pltpu


# ----------------------------------------------------------------------------
# Pallas kernels
# ----------------------------------------------------------------------------
def conv_bn_relu_kernel(x_ref, w_ref, scale_ref, bias_ref, o_ref, *,
                        stride, ksize, h_out, w_out):
    """Fused conv + folded-BN + ReLU, one batch element x one cout tile.

    x_ref    : (s*s, H_s, W_s, Cin)  phase-decomposed input (s == stride;
               for stride=1 this is just (1, H, W, Cin) -- no copy was made).
    w_ref    : (ksize*ksize*Cin, Ct) bf16, flattened (kh, kw, cin) major->minor.
    scale_ref: (1, Ct) f32    bias_ref: (1, Ct) f32
    o_ref    : (h_out, w_out, Ct)
    """
    cin = x_ref.shape[-1]
    ct = o_ref.shape[-1]
    rows = h_out * w_out

    # im2col: gather every (kh, kw) tap and concatenate along the channel axis
    # so a single MXU dot does the whole contraction (K = ksize*ksize*cin).
    patches = []
    for kh in range(ksize):
        for kw in range(ksize):
            phase = (kh % stride) * stride + (kw % stride)
            p = x_ref[phase,
                      pl.ds(kh // stride, h_out),
                      pl.ds(kw // stride, w_out), :]
            patches.append(p.reshape(rows, cin))
    cols = patches[0] if len(patches) == 1 else jnp.concatenate(patches, axis=-1)
    cols = cols.astype(jnp.bfloat16)

    y = jnp.dot(cols, w_ref[...], preferred_element_type=jnp.float32)
    y = y * scale_ref[...] + bias_ref[...]
    y = jnp.maximum(y, 0.0)
    o_ref[...] = y.reshape(h_out, w_out, ct).astype(o_ref.dtype)


def maxpool_kernel(x_ref, o_ref, *, stride, ksize, h_out, w_out):
    """3x3 / s2 VALID max-pool, one batch element x one channel tile."""
    c = o_ref.shape[-1]
    res = jnp.full((h_out, w_out, c), -jnp.inf, dtype=jnp.float32)
    for kh in range(ksize):
        for kw in range(ksize):
            phase = (kh % stride) * stride + (kw % stride)
            patch = x_ref[phase,
                          pl.ds(kh // stride, h_out),
                          pl.ds(kw // stride, w_out), :]
            res = jnp.maximum(res, patch.astype(jnp.float32))
    o_ref[...] = res.astype(o_ref.dtype)


# ----------------------------------------------------------------------------
# Wrappers (padding, phase decomposition, pallas_call plumbing)
# ----------------------------------------------------------------------------
def _phase_split(x, stride):
    """(N,H,W,C) -> (N, s*s, ceil(H/s), ceil(W/s), C); zero-copy for s == 1.

    Phase (p,q) holds x[:, p::s, q::s, :]; the zero-padded tail rows/cols are
    never read by the VALID-window kernels below (verified arithmetic for the
    3x3/s2 configs used here).
    """
    n, h, w, c = x.shape
    if stride == 1:
        return x.reshape(n, 1, h, w, c), h, w
    hs = -(-h // stride)
    ws = -(-w // stride)
    out = jnp.zeros((n, stride * stride, hs, ws, c), x.dtype)
    for p in range(stride):
        for q in range(stride):
            sub = x[:, p::stride, q::stride, :]
            out = out.at[:, p * stride + q, :sub.shape[1], :sub.shape[2], :].set(sub)
    return out, hs, ws


_COMPILER_PARAMS = pltpu.CompilerParams(
    dimension_semantics=("parallel", "parallel"),
    vmem_limit_bytes=32 * 1024 * 1024)


def _cout_tile(c):
    # Lane-dense 128-wide output tiles at real Inception sizes (256/384 ch);
    # fall back to the full (small) channel count otherwise.
    return 128 if c % 128 == 0 else c


def conv_bn_relu(x_phased, w, scale, bias, *, stride, h_out, w_out,
                 out_dtype=jnp.float32):
    n, ss, hs, ws, cin = x_phased.shape
    ksize = w.shape[0]
    cout = w.shape[-1]
    kkc = ksize * ksize * cin
    w2 = w.reshape(kkc, cout).astype(jnp.bfloat16)   # bf16 weights, im2col layout
    ct = _cout_tile(cout)
    grid = (n, cout // ct)
    kern = functools.partial(conv_bn_relu_kernel, stride=stride, ksize=ksize,
                             h_out=h_out, w_out=w_out)
    flops = 2 * n * h_out * w_out * kkc * cout
    bytes_accessed = (int(x_phased.size) * x_phased.dtype.itemsize
                      + int(w2.size) * 2
                      + n * h_out * w_out * cout * jnp.dtype(out_dtype).itemsize)
    return pl.pallas_call(
        kern,
        out_shape=jax.ShapeDtypeStruct((n, h_out, w_out, cout), out_dtype),
        grid=grid,
        in_specs=[
            # x block is constant along the (minor) channel-tile axis, so it
            # stays resident in VMEM across cout tiles of the same image.
            pl.BlockSpec((None, ss, hs, ws, cin), lambda b, j: (b, 0, 0, 0, 0)),
            pl.BlockSpec((kkc, ct), lambda b, j: (0, j)),
            pl.BlockSpec((1, ct), lambda b, j: (0, j)),
            pl.BlockSpec((1, ct), lambda b, j: (0, j)),
        ],
        out_specs=pl.BlockSpec((None, h_out, w_out, ct),
                               lambda b, j: (b, 0, 0, j)),
        compiler_params=_COMPILER_PARAMS,
        cost_estimate=pl.CostEstimate(flops=flops, transcendentals=0,
                                      bytes_accessed=bytes_accessed),
    )(x_phased, w2, scale, bias)


def maxpool2d(x_phased, *, ksize, stride, h_out, w_out):
    n, ss, hs, ws, c = x_phased.shape
    ct = _cout_tile(c)
    grid = (n, c // ct)
    kern = functools.partial(maxpool_kernel, stride=stride, ksize=ksize,
                             h_out=h_out, w_out=w_out)
    bytes_accessed = (int(x_phased.size) * x_phased.dtype.itemsize
                      + n * h_out * w_out * c * 4)
    return pl.pallas_call(
        kern,
        out_shape=jax.ShapeDtypeStruct((n, h_out, w_out, c), jnp.float32),
        grid=grid,
        in_specs=[
            pl.BlockSpec((None, ss, hs, ws, ct), lambda b, j: (b, 0, 0, 0, j)),
        ],
        out_specs=pl.BlockSpec((None, h_out, w_out, ct),
                               lambda b, j: (b, 0, 0, j)),
        compiler_params=_COMPILER_PARAMS,
        cost_estimate=pl.CostEstimate(
            flops=n * h_out * w_out * ksize * ksize * c, transcendentals=0,
            bytes_accessed=bytes_accessed),
    )(x_phased)


# ----------------------------------------------------------------------------
# ReductionA forward (NCHW in / NCHW out, like the PyTorch module)
# ----------------------------------------------------------------------------
def reduction_a(x_nchw, p_conv12, p_conv13a, p_conv13b, p_conv13c):
    x = jnp.transpose(x_nchw, (0, 2, 3, 1)).astype(jnp.float32)   # NCHW -> NHWC
    n, h, w, _ = x.shape
    h2 = (h - 3) // 2 + 1
    w2 = (w - 3) // 2 + 1

    # Stride-2 phase decomposition of x, computed ONCE and shared by
    # maxpool_1_1 and conv_1_2.
    xps, _, _ = _phase_split(x, 2)

    b1 = maxpool2d(xps, ksize=3, stride=2, h_out=h2, w_out=w2)        # maxpool_1_1
    b2 = conv_bn_relu(xps, *p_conv12, stride=2, h_out=h2, w_out=w2)   # conv_1_2

    # conv_1_3: 1x1 same -> 3x3 same -> 3x3 /2  (intermediates kept in bf16)
    t, _, _ = _phase_split(x, 1)                                      # no copy
    t = conv_bn_relu(t, *p_conv13a, stride=1, h_out=h, w_out=w,
                     out_dtype=jnp.bfloat16)
    t = jnp.pad(t, ((0, 0), (1, 1), (1, 1), (0, 0)))
    t, _, _ = _phase_split(t, 1)                                      # no copy
    t = conv_bn_relu(t, *p_conv13b, stride=1, h_out=h, w_out=w,
                     out_dtype=jnp.bfloat16)
    tps, _, _ = _phase_split(t, 2)
    b3 = conv_bn_relu(tps, *p_conv13c, stride=2, h_out=h2, w_out=w2)

    # TODO(synk): the channel concat + NHWC->NCHW transpose are two extra XLA
    # passes over the output; writing each branch into channel-offset slices
    # of one pre-allocated buffer would remove them.
    out = jnp.concatenate([b1, b2, b3], axis=-1)
    return jnp.transpose(out, (0, 3, 1, 2))                           # NHWC -> NCHW


# ----------------------------------------------------------------------------
# Pure-JAX reference (same bf16 matmul inputs / f32 accumulation)
# ----------------------------------------------------------------------------
def _conv_ref(x, w, scale, bias, stride, padding):
    y = jax.lax.conv_general_dilated(
        x.astype(jnp.bfloat16), w.astype(jnp.bfloat16),
        window_strides=(stride, stride),
        padding=[(padding, padding), (padding, padding)],
        dimension_numbers=("NHWC", "HWIO", "NHWC"),
        preferred_element_type=jnp.float32)
    y = y * scale.reshape(1, 1, 1, -1) + bias.reshape(1, 1, 1, -1)
    return jnp.maximum(y, 0.0)


def _maxpool_ref(x, ksize, stride):
    return jax.lax.reduce_window(x, -jnp.inf, jax.lax.max,
                                 (1, ksize, ksize, 1),
                                 (1, stride, stride, 1), "VALID")


def reduction_a_ref(x_nchw, p2, p3a, p3b, p3c):
    x = jnp.transpose(x_nchw, (0, 2, 3, 1)).astype(jnp.float32)
    b1 = _maxpool_ref(x, 3, 2)
    b2 = _conv_ref(x, *p2, stride=2, padding=0)
    t = _conv_ref(x, *p3a, stride=1, padding=0)
    t = _conv_ref(t, *p3b, stride=1, padding=1)
    b3 = _conv_ref(t, *p3c, stride=2, padding=0)
    return jnp.transpose(jnp.concatenate([b1, b2, b3], axis=-1), (0, 3, 1, 2))


# ----------------------------------------------------------------------------
# Main
# ----------------------------------------------------------------------------
if __name__ == "__main__":
    key = jax.random.PRNGKey(0)
    keys = jax.random.split(key, 8)

    # Small shapes consistent with the module (odd spatial size like 35x35).
    N, C_IN, H, W = 2, 8, 9, 9
    K, L, M, NCH = 8, 8, 16, 16   # k, l, m, n of ReductionA (scaled down)

    x_nchw = jax.random.normal(keys[0], (N, C_IN, H, W), jnp.float32)

    def make_cnnblock(rng, cin, cout, ks):
        kw_, kg, kb = jax.random.split(rng, 3)
        wgt = jax.random.normal(kw_, (ks, ks, cin, cout), jnp.float32) * 0.1
        gamma = jax.random.uniform(kg, (cout,), jnp.float32, 0.5, 1.5)
        beta = jax.random.normal(kb, (cout,), jnp.float32) * 0.1
        run_mean = jnp.zeros((cout,), jnp.float32)
        run_var = jnp.ones((cout,), jnp.float32)
        eps = 1e-5
        scale = gamma / jnp.sqrt(run_var + eps)
        bias = beta - run_mean * scale
        return wgt, scale.reshape(1, cout), bias.reshape(1, cout)

    p_conv12 = make_cnnblock(keys[1], C_IN, NCH, 3)   # conv_1_2: 3x3 /2
    p_conv13a = make_cnnblock(keys[2], C_IN, K, 1)    # conv_1_3[0]: 1x1 same
    p_conv13b = make_cnnblock(keys[3], K, L, 3)       # conv_1_3[1]: 3x3 same
    p_conv13c = make_cnnblock(keys[4], L, M, 3)       # conv_1_3[2]: 3x3 /2

    out = reduction_a(x_nchw, p_conv12, p_conv13a, p_conv13b, p_conv13c)
    out = jax.block_until_ready(out)

    h_out = (H - 3) // 2 + 1
    assert out.shape == (N, C_IN + NCH + M, h_out, h_out), out.shape

    ref = reduction_a_ref(x_nchw, p_conv12, p_conv13a, p_conv13b, p_conv13c)
    # bf16 matmul inputs on both paths; tolerance covers bf16 rounding of the
    # branch-3 intermediates plus f32 accumulation-order differences.
    assert jnp.allclose(out, ref, atol=1e-2, rtol=1e-2), (
        float(jnp.max(jnp.abs(out - ref))))

    print("KERNEL_OK")
</pallas_src>

<mosaic_0001>
module attributes {stable_mosaic.version = 11 : i64} {
  func.func @maxpool_kernel(%arg0: i32, %arg1: i32, %arg2: memref<1x4x5x5x8xf32, #tpu.memory_space<vmem>>, %arg3: memref<1x4x4x8xf32, #tpu.memory_space<vmem>>) attributes {dimension_semantics = [#tpu.dimension_semantics<parallel>, #tpu.dimension_semantics<parallel>], iteration_bounds = array<i64: 2, 1>, scalar_prefetch = 0 : i64, scratch_operands = 0 : i64, tpu.core_type = #tpu.core_type<tc>, window_params = [{transform_indices = @transform_0, window_bounds = array<i64: 1, 4, 5, 5, 8>}, {transform_indices = @transform_1, window_bounds = array<i64: 1, 4, 4, 8>}]} {
    %cst = arith.constant 0xFF800000 : f32
    %0 = vector.broadcast %cst : f32 to vector<4x4x8xf32>
    %c0 = arith.constant 0 : index
    %c0_0 = arith.constant 0 : index
    %c0_1 = arith.constant 0 : index
    %c0_2 = arith.constant 0 : index
    %c0_3 = arith.constant 0 : index
    %1 = vector.load %arg2[%c0, %c0_0, %c0_1, %c0_2, %c0_3] : memref<1x4x5x5x8xf32, #tpu.memory_space<vmem>>, vector<1x1x4x4x8xf32>
    %2 = vector.shape_cast %1 : vector<1x1x4x4x8xf32> to vector<4x4x8xf32>
    %3 = arith.maximumf %0, %2 : vector<4x4x8xf32>
    %c0_4 = arith.constant 0 : index
    %c1 = arith.constant 1 : index
    %c0_5 = arith.constant 0 : index
    %c0_6 = arith.constant 0 : index
    %c0_7 = arith.constant 0 : index
    %4 = vector.load %arg2[%c0_4, %c1, %c0_5, %c0_6, %c0_7] : memref<1x4x5x5x8xf32, #tpu.memory_space<vmem>>, vector<1x1x4x4x8xf32>
    %5 = vector.shape_cast %4 : vector<1x1x4x4x8xf32> to vector<4x4x8xf32>
    %6 = arith.maximumf %3, %5 : vector<4x4x8xf32>
    %c0_8 = arith.constant 0 : index
    %c0_9 = arith.constant 0 : index
    %c0_10 = arith.constant 0 : index
    %c1_11 = arith.constant 1 : index
    %c0_12 = arith.constant 0 : index
    %7 = vector.load %arg2[%c0_8, %c0_9, %c0_10, %c1_11, %c0_12] : memref<1x4x5x5x8xf32, #tpu.memory_space<vmem>>, vector<1x1x4x4x8xf32>
    %8 = vector.shape_cast %7 : vector<1x1x4x4x8xf32> to vector<4x4x8xf32>
    %9 = arith.maximumf %6, %8 : vector<4x4x8xf32>
    %c0_13 = arith.constant 0 : index
    %c2 = arith.constant 2 : index
    %c0_14 = arith.constant 0 : index
    %c0_15 = arith.constant 0 : index
    %c0_16 = arith.constant 0 : index
    %10 = vector.load %arg2[%c0_13, %c2, %c0_14, %c0_15, %c0_16] : memref<1x4x5x5x8xf32, #tpu.memory_space<vmem>>, vector<1x1x4x4x8xf32>
    %11 = vector.shape_cast %10 : vector<1x1x4x4x8xf32> to vector<4x4x8xf32>
    %12 = arith.maximumf %9, %11 : vector<4x4x8xf32>
    %c0_17 = arith.constant 0 : index
    %c3 = arith.constant 3 : index
    %c0_18 = arith.constant 0 : index
    %c0_19 = arith.constant 0 : index
    %c0_20 = arith.constant 0 : index
    %13 = vector.load %arg2[%c0_17, %c3, %c0_18, %c0_19, %c0_20] : memref<1x4x5x5x8xf32, #tpu.memory_space<vmem>>, vector<1x1x4x4x8xf32>
    %14 = vector.shape_cast %13 : vector<1x1x4x4x8xf32> to vector<4x4x8xf32>
    %15 = arith.maximumf %12, %14 : vector<4x4x8xf32>
    %c0_21 = arith.constant 0 : index
    %c2_22 = arith.constant 2 : index
    %c0_23 = arith.constant 0 : index
    %c1_24 = arith.constant 1 : index
    %c0_25 = arith.constant 0 : index
    %16 = vector.load %arg2[%c0_21, %c2_22, %c0_23, %c1_24, %c0_25] : memref<1x4x5x5x8xf32, #tpu.memory_space<vmem>>, vector<1x1x4x4x8xf32>
    %17 = vector.shape_cast %16 : vector<1x1x4x4x8xf32> to vector<4x4x8xf32>
    %18 = arith.maximumf %15, %17 : vector<4x4x8xf32>
    %c0_26 = arith.constant 0 : index
    %c0_27 = arith.constant 0 : index
    %c1_28 = arith.constant 1 : index
    %c0_29 = arith.constant 0 : index
    %c0_30 = arith.constant 0 : index
    %19 = vector.load %arg2[%c0_26, %c0_27, %c1_28, %c0_29, %c0_30] : memref<1x4x5x5x8xf32, #tpu.memory_space<vmem>>, vector<1x1x4x4x8xf32>
    %20 = vector.shape_cast %19 : vector<1x1x4x4x8xf32> to vector<4x4x8xf32>
    %21 = arith.maximumf %18, %20 : vector<4x4x8xf32>
    %c0_31 = arith.constant 0 : index
    %c1_32 = arith.constant 1 : index
    %c1_33 = arith.constant 1 : index
    %c0_34 = arith.constant 0 : index
    %c0_35 = arith.constant 0 : index
    %22 = vector.load %arg2[%c0_31, %c1_32, %c1_33, %c0_34, %c0_35] : memref<1x4x5x5x8xf32, #tpu.memory_space<vmem>>, vector<1x1x4x4x8xf32>
    %23 = vector.shape_cast %22 : vector<1x1x4x4x8xf32> to vector<4x4x8xf32>
    %24 = arith.maximumf %21, %23 : vector<4x4x8xf32>
    %c0_36 = arith.constant 0 : index
    %c0_37 = arith.constant 0 : index
    %c1_38 = arith.constant 1 : index
    %c1_39 = arith.constant 1 : index
    %c0_40 = arith.constant 0 : index
    %25 = vector.load %arg2[%c0_36, %c0_37, %c1_38, %c1_39, %c0_40] : memref<1x4x5x5x8xf32, #tpu.memory_space<vmem>>, vector<1x1x4x4x8xf32>
    %26 = vector.shape_cast %25 : vector<1x1x4x4x8xf32> to vector<4x4x8xf32>
    %27 = arith.maximumf %24, %26 : vector<4x4x8xf32>
    %c0_41 = arith.constant 0 : index
    %c0_42 = arith.constant 0 : index
    %c0_43 = arith.constant 0 : index
    %c0_44 = arith.constant 0 : index
    %28 = vector.load %arg3[%c0_41, %c0_42, %c0_43, %c0_44] : memref<1x4x4x8xf32, #tpu.memory_space<vmem>>, vector<1x4x4x8xf32>
    %29 = vector.shape_cast %28 : vector<1x4x4x8xf32> to vector<4x4x8xf32>
    %30 = vector.shape_cast %27 : vector<4x4x8xf32> to vector<1x4x4x8xf32>
    tpu.vector_store %arg3[%c0_41, %c0_42, %c0_43, %c0_44], %30 {strides = array<i32>} : memref<1x4x4x8xf32, #tpu.memory_space<vmem>>, vector<1x4x4x8xf32>,
    return
  }
  func.func @transform_0(%arg0: i32, %arg1: i32) -> (i32, i32, i32, i32, i32) {
    %c0_i32 = arith.constant 0 : i32
    %c0_i32_0 = arith.constant 0 : i32
    %c0_i32_1 = arith.constant 0 : i32
    %c0_i32_2 = arith.constant 0 : i32
    return %arg0, %c0_i32, %c0_i32_0, %c0_i32_1, %arg1 : i32, i32, i32, i32, i32
  }
  func.func @transform_1(%arg0: i32, %arg1: i32) -> (i32, i32, i32, i32) {
    %c0_i32 = arith.constant 0 : i32
    %c0_i32_0 = arith.constant 0 : i32
    %c0_i32_1 = arith.constant 0 : i32
    return %arg0, %c0_i32, %c0_i32_0, %arg1 : i32, i32, i32, i32
  }
}

</mosaic_0001>

<llo_original>
// kernel: tpu_custom_call.1
$region0: #{tpu_custom_call.1}
  #allocation0 [shape = 'u32[]', space=smem, size = 0x4, offset = 0x4, fixed_abs, tag = 'smem constant byte address 0x4 - core index']
  #allocation1 [shape = 'u32[144,128]{1,0:T(1,128)}', space=vmem, size = 0x12000, scoped, tag = 'internal scratch']
  %s0 = inlined_call_operand.vmem [shape: f32[2,4,5,5,8], index: 0, kind: input, shape index: {}]
  %s1 = inlined_call_operand.hbm [shape: f32[2,4,4,8], index: 1, kind: output, shape index: {}]
  %s2 = sld [smem:[#allocation0]]
  $region37: #{tpu_custom_call.1} parent=0
    _
  %s4 = ssub.s32 1, %s2
  %s5 = scalar_select 0, %s4, %s2
  $region1: #{tpu_custom_call.1} parent=0
    #allocation2 [shape = 'u8[16384]{0}', space=vmem, size = 0x4000, scoped, tag = 'output window, operand 0']
    #allocation3 [shape = 's32[2]{0}', space=sflag, size = 0x8, scoped, tag = 'scoped memory for tpu_custom_call.1']
    %6 = vsyncpa [#allocation3], 0
    %s7 = scalar_lea.sflag [#allocation3], 1
    %8 = vsyncpa %s7, 0
    loop: start=0, step=1, limit=4
    $region2: #{tpu_custom_call.1} parent=1 // loop_pre_header
      _
    $region3: #{tpu_custom_call.1} parent=1 // loop_header
      %s10 = sphi 0, %s14
      %p11 = scmp.ge.s32.totalorder %s10, 4
      %s17 = sphi 0, %s29
      %s18 = sphi 0, %s25
      %s19 = sphi 0, %s17
      %s20 = sphi 0, %s18
      %s21 = sphi 0, %s19
      %s22 = sphi 0, %s20
      %s34 = sphi 0, %s36
      %s37 = sphi 0, %s34
      %s38 = sphi 0, %s37
      %s54 = sphi 0, %s38
      %s62 = sphi 0, %s64
      %s65 = sphi 0, %s62
      %s66 = sphi 0, %s65
      %s82 = sphi 0, %s66
    $region4: #{tpu_custom_call.1} parent=1 // loop_header_branch
      %13 = sbr.rel (%p11) target = $region8
    $region5: #{tpu_custom_call.1} parent=1 // loop_body
      %s15 = ssub.s32 %s10, 1
      %s16 = ssub.s32 %s10, 2
      %s23 = sadd.s32 1, %s18
      %p24 = scmp.ge.s32.totalorder %s23, 1
      %s25 = scalar_select %p24, 0, %s23
      %s26 = sadd.s32 1, %s17
      %s27 = scalar_select %p24, %s26, %s17
      %p28 = scmp.ge.s32.totalorder %s27, 2
      %s29 = scalar_select %p28, 0, %s27
      %s30 = ssub.s32 %s17, %s29
      %s31 = ssub.s32 %s18, %s25
      %s32 = sor.u32 %s30, %s31
      %p33 = scmp.eq.s32.totalorder %s32, 0
      %s35 = sadd.s32 %s34, 1
      %s36 = scalar_select %p33, %s34, %s35
      %p39 = pneg %p33
      %p40 = scmp.eq.s32.totalorder %s10, 1
      %p41 = por %p39, %p40
      %p42 = scmp.ne.s32.totalorder %s34, %s37
      %p43 = scmp.eq.s32.totalorder %s10, 0
      %p44 = por %p42, %p43
      %p45 = scmp.ne.s32.totalorder %s34, %s37
      %p46 = scmp.eq.s32.totalorder %s15, 1
      %p47 = por %p45, %p46
      %p48 = scmp.ne.s32.totalorder %s37, %s38
      %p49 = scmp.eq.s32.totalorder %s15, 0
      %p50 = por %p48, %p49
      %p51 = scmp.ne.s32.totalorder %s37, %s38
      %p52 = scmp.eq.s32.totalorder %s16, 1
      %p53 = por %p51, %p52
      %p55 = scmp.ne.s32.totalorder %s38, %s54
      %p56 = scmp.eq.s32.totalorder %s16, 0
      %p57 = por %p55, %p56
      %s58 = ssub.s32 %s17, %s29
      %s59 = ssub.s32 %s18, %s25
      %s60 = sor.u32 %s58, %s59
      %p61 = scmp.eq.s32.totalorder %s60, 0
      %s63 = sadd.s32 %s62, 1
      %s64 = scalar_select %p61, %s62, %s63
      %p67 = pneg %p61
      %p68 = scmp.eq.s32.totalorder %s10, 1
      %p69 = por %p67, %p68
      %p70 = scmp.ne.s32.totalorder %s62, %s65
      %p71 = scmp.eq.s32.totalorder %s10, 0
      %p72 = por %p70, %p71
      %p73 = scmp.ne.s32.totalorder %s62, %s65
      %p74 = scmp.eq.s32.totalorder %s15, 1
      %p75 = por %p73, %p74
      %p76 = scmp.ne.s32.totalorder %s65, %s66
      %p77 = scmp.eq.s32.totalorder %s15, 0
      %p78 = por %p76, %p77
      %p79 = scmp.ne.s32.totalorder %s65, %s66
      %p80 = scmp.eq.s32.totalorder %s16, 1
      %p81 = por %p79, %p80
      %p83 = scmp.ne.s32.totalorder %s66, %s82
      %p84 = scmp.eq.s32.totalorder %s16, 0
      %p85 = por %p83, %p84
      %p86 = scmp.le.s32.totalorder 1, %s10
      %p87 = scmp.lt.s32.totalorder %s10, 3
      %p88 = pnand %p86, %p87
      %p89 = pneg %p88
      // Predicated region
      $region9: #{tpu_custom_call.1} parent=5 // pred_check
        _
      $region10: #{tpu_custom_call.1} parent=5 // pred_check_branch
        %91 = sbr.rel (%p88) target = $region12
      $region11: #{tpu_custom_call.1} parent=5 // pred_region
        %s92 = ssub.s32 %s10, 1
      $region12: #{tpu_custom_call.1} parent=5 // pred_fallthru
        _
      %p93 = scmp.lt.s32.totalorder %s10, 2
      // Predicated region
      $region13: #{tpu_custom_call.1} parent=5 // pred_check
        %p94 = pneg %p93
      $region14: #{tpu_custom_call.1} parent=5 // pred_check_branch
        %96 = sbr.rel (%p94) target = $region16
      $region15: #{tpu_custom_call.1} parent=5 // pred_region
        // Predicated region
        $region17: #{tpu_custom_call.1} parent=15 // pred_check
          %p97 = pneg %p44
        $region18: #{tpu_custom_call.1} parent=15 // pred_check_branch
          %99 = sbr.rel (%p97) target = $region20
        $region19: #{tpu_custom_call.1} parent=15 // pred_region
          %p100 = scmp.lt.s32.totalorder %s17, 1
          %s101 = scalar_select %p100, %s17, 1
          %p102 = scmp.lt.s32.totalorder %s18, 0
          %s103 = scalar_select %p102, %s18, 0
          %s104 = smul.addr %s101, 20
          %s105 = sadd.s32 %s103, %s104
          %s106 = smul.addr %s105, 8
          %s107 = scalar_lea.vmem %s0, %s106
        $region20: #{tpu_custom_call.1} parent=15 // pred_fallthru
          _
      $region16: #{tpu_custom_call.1} parent=5 // pred_fallthru
        _
      %p108 = scmp.le.s32.totalorder 1, %s10
      %p109 = scmp.lt.s32.totalorder %s10, 3
      %p110 = pnand %p108, %p109
      %p111 = pneg %p110
      // Predicated region
      $region21: #{tpu_custom_call.1} parent=5 // pred_check
        _
      $region22: #{tpu_custom_call.1} parent=5 // pred_check_branch
        %113 = sbr.rel (%p110) target = $region24
      $region23: #{tpu_custom_call.1} parent=5 // pred_region
        %s114 = ssub.s32 %s10, 1
        %p115 = scmp.lt.s32.totalorder %s19, 1
        %s116 = scalar_select %p115, %s19, 1
        %p117 = scmp.lt.s32.totalorder %s20, 0
        %s118 = scalar_select %p117, %s20, 0
        %s119 = smul.addr %s116, 20
        %s120 = sadd.s32 %s118, %s119
        %s121 = smul.addr %s120, 8
        %s122 = scalar_lea.vmem %s0, %s121
        %p123 = pneg %p50
        %p124 = pneg %p47
        %p125 = pneg %p78
        %p126 = pneg %p75
        %s127 = sand.u32 %s65, 1
        %s128 = scalar_lea.sflag [#allocation3], %s127
        %s129 = sand.u32 %s65, 1
        %s130 = smul.addr %s129, 16
        %s131 = scalar_lea.vmem [#allocation2], %s130
        %p132 = scmp.lt.s32.totalorder %s19, 1
        %s133 = scalar_select %p132, %s19, 1
        %p134 = scmp.lt.s32.totalorder %s20, 0
        %s135 = scalar_select %p134, %s20, 0
        %s136 = smul.addr %s133, 20
        %s137 = sadd.s32 %s135, %s136
        %s138 = smul.addr %s137, 8
        %s139 = scalar_lea.vmem %s0, %s138
        %v140 = vld [vmem:[%s139] sm:$0xf]
        %v141 = vld [vmem:[%s139 + $0x8] sm:$0xf]
        %v142 = vld [vmem:[%s139 + $0x10] sm:$0xf]
        %v143 = vld [vmem:[%s139 + $0x18] sm:$0xf]
        %s144 = scalar_lea.vmem %s139, 40
        %v145 = vld [vmem:[%s144] sm:$0xf]
        %v146 = vld [vmem:[%s144 + $0x8] sm:$0xf]
        %v147 = vld [vmem:[%s144 + $0x10] sm:$0xf]
        %v148 = vld [vmem:[%s144 + $0x18] sm:$0xf]
        %v149 = vmax.f32 %v140, %v145
        %v150 = vmax.f32 %v141, %v146
        %v151 = vmax.f32 %v142, %v147
        %v152 = vmax.f32 %v143, %v148
        %v153 = vld [vmem:[%s139 + $0x1] sm:$0xf]
        %v154 = vld [vmem:[%s139 + $0x9] sm:$0xf]
        %v155 = vld [vmem:[%s139 + $0x11] sm:$0xf]
        %v156 = vld [vmem:[%s139 + $0x19] sm:$0xf]
        %v157 = vmax.f32 %v149, %v153
        %v158 = vmax.f32 %v150, %v154
        %v159 = vmax.f32 %v151, %v155
        %v160 = vmax.f32 %v152, %v156
        %s161 = scalar_lea.vmem %s139, 80
        %v162 = vld [vmem:[%s161] sm:$0xf]
        %v163 = vld [vmem:[%s161 + $0x8] sm:$0xf]
        %v164 = vld [vmem:[%s161 + $0x10] sm:$0xf]
        %v165 = vld [vmem:[%s161 + $0x18] sm:$0xf]
        %v166 = vmax.f32 %v157, %v162
        %v167 = vmax.f32 %v158, %v163
        %v168 = vmax.f32 %v159, %v164
        %v169 = vmax.f32 %v160, %v165
        %s170 = scalar_lea.vmem %s139, 120
        %v171 = vld [vmem:[%s170] sm:$0xf]
        %v172 = vld [vmem:[%s170 + $0x8] sm:$0xf]
        %v173 = vld [vmem:[%s170 + $0x10] sm:$0xf]
        %v174 = vld [vmem:[%s170 + $0x18] sm:$0xf]
        %v175 = vmax.f32 %v166, %v171
        %v176 = vmax.f32 %v167, %v172
        %v177 = vmax.f32 %v168, %v173
        %v178 = vmax.f32 %v169, %v174
        %v179 = vld [vmem:[%s161 + $0x1] sm:$0xf]
        %v180 = vld [vmem:[%s161 + $0x9] sm:$0xf]
        %v181 = vld [vmem:[%s161 + $0x11] sm:$0xf]
        %v182 = vld [vmem:[%s161 + $0x19] sm:$0xf]
        %v183 = vmax.f32 %v175, %v179
        %v184 = vmax.f32 %v176, %v180
        %v185 = vmax.f32 %v177, %v181
        %v186 = vmax.f32 %v178, %v182
        %s187 = scalar_lea.vmem %s139, 8
        %v188 = vld [vmem:[%s187] sm:$0xf]
        %v189 = vld [vmem:[%s187 + $0x8] sm:$0xf]
        %v190 = vld [vmem:[%s187 + $0x10] sm:$0xf]
        %v191 = vld [vmem:[%s187 + $0x18] sm:$0xf]
        %v192 = vmax.f32 %v183, %v188
        %v193 = vmax.f32 %v184, %v189
        %v194 = vmax.f32 %v185, %v190
        %v195 = vmax.f32 %v186, %v191
        %s196 = scalar_lea.vmem %s139, 48
        %v197 = vld [vmem:[%s196] sm:$0xf]
        %v198 = vld [vmem:[%s196 + $0x8] sm:$0xf]
        %v199 = vld [vmem:[%s196 + $0x10] sm:$0xf]
        %v200 = vld [vmem:[%s196 + $0x18] sm:$0xf]
        %v201 = vmax.f32 %v192, %v197
        %v202 = vmax.f32 %v193, %v198
        %v203 = vmax.f32 %v194, %v199
        %v204 = vmax.f32 %v195, %v200
        %v205 = vld [vmem:[%s187 + $0x1] sm:$0xf]
        %v206 = vld [vmem:[%s187 + $0x9] sm:$0xf]
        %v207 = vld [vmem:[%s187 + $0x11] sm:$0xf]
        %v208 = vld [vmem:[%s187 + $0x19] sm:$0xf]
        %v209 = vmax.f32 %v201, %v205
        %v210 = vmax.f32 %v202, %v206
        %v211 = vmax.f32 %v203, %v207
        %v212 = vmax.f32 %v204, %v208
        %vm213 = vcmask 60416
        %214 = vst.msk [vmem:[%s131] sm:$0xf] %vm213, %v209
        %215 = vst.msk [vmem:[%s131 + $0x4] sm:$0xf] %vm213, %v210
        %216 = vst.msk [vmem:[%s131 + $0x8] sm:$0xf] %vm213, %v211
        %217 = vst.msk [vmem:[%s131 + $0xc] sm:$0xf] %vm213, %v212
        %s218 = sand.u32 %s65, 1
        %s219 = scalar_lea.sflag [#allocation3], %s218
        %s220 = sand.u32 %s65, 1
        %s221 = smul.addr %s220, 16
        %s222 = scalar_lea.vmem [#allocation2], %s221
        // Predicated region
        $region25: #{tpu_custom_call.1} parent=23 // pred_check
          %p223 = pneg %p75
        $region26: #{tpu_custom_call.1} parent=23 // pred_check_branch
          %225 = sbr.rel (%p223) target = $region28
        $region27: #{tpu_custom_call.1} parent=23 // pred_region
          %s227 = ssub.s32 256, 256
          %228 = vsyncadd %s219, %s227
          %s229 = smul.addr %s19, 4
          %s230 = sadd.s32 %s20, %s229
          %s231 = smul.addr %s230, 64
          %s232 = scalar_lea.hbm %s1, %s231
          %s233 = sshll.u32 %s222, 4
          %s234 = int_to_ptr.vmem [resolvable:$true] %s233
          %239 = dma.vmem_to_hbm [thread:$0]  %s234, 256, %s232, %s219, 64, 64, 4
        $region28: #{tpu_custom_call.1} parent=23 // pred_fallthru
          _
      $region24: #{tpu_custom_call.1} parent=5 // pred_fallthru
        _
      %p240 = scmp.le.s32.totalorder 2, %s10
      // Predicated region
      $region29: #{tpu_custom_call.1} parent=5 // pred_check
        %p241 = pneg %p240
      $region30: #{tpu_custom_call.1} parent=5 // pred_check_branch
        %243 = sbr.rel (%p241) target = $region32
      $region31: #{tpu_custom_call.1} parent=5 // pred_region
        %s244 = ssub.s32 %s10, 2
        // Predicated region
        $region33: #{tpu_custom_call.1} parent=31 // pred_check
          %p245 = pneg %p81
        $region34: #{tpu_custom_call.1} parent=31 // pred_check_branch
          %247 = sbr.rel (%p245) target = $region36
        $region35: #{tpu_custom_call.1} parent=31 // pred_region
          %s248 = sand.u32 %s66, 1
          %s249 = scalar_lea.sflag [#allocation3], %s248
          %s250 = sand.u32 %s66, 1
          %s251 = smul.addr %s250, 16
          %s252 = scalar_lea.vmem [#allocation2], %s251
          %253 = dma.done %s249, 256
        $region36: #{tpu_custom_call.1} parent=31 // pred_fallthru
          _
      $region32: #{tpu_custom_call.1} parent=5 // pred_fallthru
        _
    $region6: #{tpu_custom_call.1} parent=1 // loop_footer
      %s14 = sadd.s32 1, %s10
    $region7: #{tpu_custom_call.1} parent=1 // loop_footer_branch
      %9 = sbr.rel target = $region3
    $region8: #{tpu_custom_call.1} parent=1 // loop_exit
      _
    %254 = vsyncpa [#allocation3], 1
    %s255 = scalar_lea.sflag [#allocation3], 1
    %256 = vsyncpa %s255, 1

</llo_original>
